<compile_context>
chip_gen: v7x
topology: tpu7x:2x2x1
jax: 0.10.0
libtpu: 0.0.40
codegen_flags: <defaults>
</compile_context>

<pallas_src>
import functools

import jax
import jax.numpy as jnp
from jax.experimental import pallas as pl
from jax.experimental.pallas import tpu as pltpu

EPS = 1e-5
LANES = 128
SUBLANES = 8
TILE_ROWS = 2048                     # 2048 x 128 f32 = 1 MiB per block
SMALL_MAX_BYTES = 4 * (1 << 20)      # single-block resident path threshold


def _bn_small_kernel(x_ref, gamma_ref, beta_ref, o_ref, *, inv_n):
    """Whole slab in VMEM (single grid point): fused stats + normalize."""
    x = x_ref[...].astype(jnp.float32)
    s1 = jnp.sum(x)
    s2 = jnp.sum(x * x)
    mean = s1 * inv_n
    var = jnp.maximum(s2 * inv_n - mean * mean, 0.0)   # guard E[x^2]-mean^2 >= 0
    scale = gamma_ref[0] * jax.lax.rsqrt(var + EPS)
    shift = beta_ref[0] - mean * scale
    o_ref[...] = (x * scale + shift).astype(o_ref.dtype)


def _stats_kernel(x_ref, acc_ref, *, valid_rows):
    """Phase 1: per-core partial sum / sumsq into (8,128) vector accumulators."""
    c = pl.program_id(0)            # core-split half (parallel on v7x megacore)
    k = pl.program_id(1)            # tile within the half (arbitrary)

    @pl.when(k == 0)
    def _():
        acc_ref[...] = jnp.zeros_like(acc_ref)

    tile_rows, lanes = x_ref.shape
    # Global (un-clamped) row index of this tile.  Rows beyond the real slab
    # (ragged last block / duplicated clamped block) are masked to zero before
    # accumulation; zero-padded lanes already contribute nothing.
    row0 = (c * pl.num_programs(1) + k) * tile_rows
    rid = row0 + jax.lax.broadcasted_iota(jnp.int32, (tile_rows, 1), 0)
    x = x_ref[...].astype(jnp.float32)
    x = jnp.where(rid < valid_rows, x, 0.0)

    # Reduce (tile_rows, 128) -> (8, 128) with pure vreg adds (no XLU tree).
    xg = x.reshape(tile_rows // SUBLANES, SUBLANES, lanes)
    acc_ref[0, 0] += jnp.sum(xg, axis=0)
    acc_ref[0, 1] += jnp.sum(xg * xg, axis=0)


def _normalize_kernel(acc_ref, gamma_ref, beta_ref, x_ref, o_ref, *, inv_n):
    """Phase 2: y = x*scale + shift; scale/shift folded in from raw partials."""
    acc = acc_ref[...]                      # (2, 2, 8, 128) per-core partials
    s1 = jnp.sum(acc[:, 0])
    s2 = jnp.sum(acc[:, 1])
    mean = s1 * inv_n
    var = jnp.maximum(s2 * inv_n - mean * mean, 0.0)
    scale = gamma_ref[0] * jax.lax.rsqrt(var + EPS)
    shift = beta_ref[0] - mean * scale
    o_ref[...] = (x_ref[...].astype(jnp.float32) * scale
                  + shift).astype(o_ref.dtype)


def norm_layer_forward(x, gamma, beta, *, force_tiled=False):
    """x: (N, H, W). gamma, beta: (1,) affine params of BatchNorm2d(1)."""
    N, H, W = x.shape
    total = N * H * W
    inv_n = 1.0 / float(total)
    gamma_f = gamma.reshape(1).astype(jnp.float32)
    beta_f = beta.reshape(1).astype(jnp.float32)

    rows = pl.cdiv(total, LANES)
    padded_total = rows * LANES
    flat = x.reshape(total)
    if padded_total != total:
        # One extra pass; only hit when total % 128 != 0.
        flat = jnp.pad(flat, (0, padded_total - total))
    slab = flat.reshape(rows, LANES)
    slab_bytes = padded_total * x.dtype.itemsize

    use_tiled = (force_tiled or slab_bytes > SMALL_MAX_BYTES) and rows >= SUBLANES

    if not use_tiled:
        out_slab = pl.pallas_call(
            functools.partial(_bn_small_kernel, inv_n=inv_n),
            out_shape=jax.ShapeDtypeStruct((rows, LANES), x.dtype),
            in_specs=[
                pl.BlockSpec((rows, LANES), lambda: (0, 0)),
                pl.BlockSpec(memory_space=pltpu.MemorySpace.SMEM),
                pl.BlockSpec(memory_space=pltpu.MemorySpace.SMEM),
            ],
            out_specs=pl.BlockSpec((rows, LANES), lambda: (0, 0)),
            compiler_params=pltpu.CompilerParams(vmem_limit_bytes=32 << 20),
        )(slab, gamma_f, beta_f)
    else:
        tile_rows = min(TILE_ROWS, (rows // SUBLANES) * SUBLANES)
        n_tiles = pl.cdiv(rows, tile_rows)
        half = pl.cdiv(n_tiles, 2)          # tiles per core-split half

        # Phase 1: partial (sum, sumsq) per half.  Block indices past the end
        # (odd tile count) are clamped in-bounds; their contribution is zeroed
        # in-kernel by the global row mask.
        def x_stats_map(c, k):
            return (jnp.minimum(c * half + k, n_tiles - 1), 0)

        acc = pl.pallas_call(
            functools.partial(_stats_kernel, valid_rows=rows),
            out_shape=jax.ShapeDtypeStruct((2, 2, SUBLANES, LANES), jnp.float32),
            grid=(2, half),
            in_specs=[pl.BlockSpec((tile_rows, LANES), x_stats_map)],
            out_specs=pl.BlockSpec((1, 2, SUBLANES, LANES),
                                   lambda c, k: (c, 0, 0, 0)),
            compiler_params=pltpu.CompilerParams(
                dimension_semantics=("parallel", "arbitrary")),
        )(slab)

        # Phase 2: fully parallel elementwise normalize; scale/shift derived
        # in-kernel from the raw partials (no XLA epilogue between the calls).
        out_slab = pl.pallas_call(
            functools.partial(_normalize_kernel, inv_n=inv_n),
            out_shape=jax.ShapeDtypeStruct((rows, LANES), x.dtype),
            grid=(n_tiles,),
            in_specs=[
                pl.BlockSpec((2, 2, SUBLANES, LANES), lambda i: (0, 0, 0, 0)),
                pl.BlockSpec(memory_space=pltpu.MemorySpace.SMEM),
                pl.BlockSpec(memory_space=pltpu.MemorySpace.SMEM),
                pl.BlockSpec((tile_rows, LANES), lambda i: (i, 0)),
            ],
            out_specs=pl.BlockSpec((tile_rows, LANES), lambda i: (i, 0)),
            compiler_params=pltpu.CompilerParams(
                dimension_semantics=("parallel",)),
        )(acc, gamma_f, beta_f, slab)

    out_flat = out_slab.reshape(padded_total)
    if padded_total != total:
        out_flat = out_flat[:total]
    return out_flat.reshape(N, H, W)


if __name__ == "__main__":
    keys = jax.random.split(jax.random.PRNGKey(0), 3)

    # BatchNorm2d(1) default affine parameters (gamma=1, beta=0).
    gamma = jnp.ones((1,), dtype=jnp.float32)
    beta = jnp.zeros((1,), dtype=jnp.float32)

    def reference(x):
        mean = jnp.mean(x)
        var = jnp.mean((x - mean) ** 2)        # biased, training-mode stats
        return (x - mean) * jax.lax.rsqrt(var + EPS) * gamma[0] + beta[0]

    # 1) Small, 128-aligned total -> single-block resident path, no pad/slice.
    x1 = jax.random.normal(keys[0], (2, 16, 16), jnp.float32) * 3.0 + 1.5
    o1 = jax.block_until_ready(norm_layer_forward(x1, gamma, beta))
    assert o1.shape == x1.shape
    assert float(jnp.max(jnp.abs(o1 - reference(x1)))) < 1e-4

    # 2) Small, unaligned total -> exercises the pad + unpad path.
    x2 = jax.random.normal(keys[1], (2, 16, 15), jnp.float32) * 2.0 - 0.5
    o2 = jax.block_until_ready(norm_layer_forward(x2, gamma, beta))
    assert o2.shape == x2.shape
    assert float(jnp.max(jnp.abs(o2 - reference(x2)))) < 1e-4

    # 3) Two-phase tiled path (forced): odd tile count exercises the 2-core
    #    split with a clamped duplicate block and a ragged last tile.
    x3 = jax.random.normal(keys[2], (4, 400, 328), jnp.float32) * 1.7 + 0.3
    o3 = jax.block_until_ready(
        norm_layer_forward(x3, gamma, beta, force_tiled=True))
    assert o3.shape == x3.shape
    assert float(jnp.max(jnp.abs(o3 - reference(x3)))) < 2e-4

    print("KERNEL_OK")
</pallas_src>

<mosaic_0001>
module attributes {stable_mosaic.version = 11 : i64} {
  func.func @_bn_small_kernel(%arg0: memref<4x128xf32, #tpu.memory_space<vmem>>, %arg1: memref<1xf32, #tpu.memory_space<smem>>, %arg2: memref<1xf32, #tpu.memory_space<smem>>, %arg3: memref<4x128xf32, #tpu.memory_space<vmem>>) attributes {dimension_semantics = [], scalar_prefetch = 0 : i64, scratch_operands = 0 : i64, tpu.core_type = #tpu.core_type<tc>} {
    %c0 = arith.constant 0 : index
    %c0_0 = arith.constant 0 : index
    %0 = vector.load %arg0[%c0, %c0_0] : memref<4x128xf32, #tpu.memory_space<vmem>>, vector<4x128xf32>
    %1 = vector.shape_cast %0 : vector<4x128xf32> to vector<1x4x128xf32>
    %cst = arith.constant dense<0.000000e+00> : vector<1xf32>
    %2 = vector.multi_reduction <add>, %1, %cst [1, 2] : vector<1x4x128xf32> to vector<1xf32>
    %3 = vector.shape_cast %2 : vector<1xf32> to vector<1x1x1xf32>
    %4 = vector.extract %3[0, 0, 0] : f32 from vector<1x1x1xf32>
    %5 = arith.mulf %0, %0 : vector<4x128xf32>
    %6 = vector.shape_cast %5 : vector<4x128xf32> to vector<1x4x128xf32>
    %cst_1 = arith.constant dense<0.000000e+00> : vector<1xf32>
    %7 = vector.multi_reduction <add>, %6, %cst_1 [1, 2] : vector<1x4x128xf32> to vector<1xf32>
    %8 = vector.shape_cast %7 : vector<1xf32> to vector<1x1x1xf32>
    %9 = vector.extract %8[0, 0, 0] : f32 from vector<1x1x1xf32>
    %cst_2 = arith.constant 0.001953125 : f32
    %10 = arith.mulf %4, %cst_2 : f32
    %cst_3 = arith.constant 0.001953125 : f32
    %11 = arith.mulf %9, %cst_3 : f32
    %12 = arith.mulf %10, %10 : f32
    %13 = arith.subf %11, %12 : f32
    %cst_4 = arith.constant 0.000000e+00 : f32
    %14 = arith.maximumf %13, %cst_4 : f32
    %c0_5 = arith.constant 0 : index
    %15 = memref.load %arg1[%c0_5] : memref<1xf32, #tpu.memory_space<smem>>
    %cst_6 = arith.constant 9.99999974E-6 : f32
    %16 = arith.addf %14, %cst_6 : f32
    %17 = math.rsqrt %16 : f32
    %18 = arith.mulf %15, %17 : f32
    %c0_7 = arith.constant 0 : index
    %19 = memref.load %arg2[%c0_7] : memref<1xf32, #tpu.memory_space<smem>>
    %20 = arith.mulf %10, %18 : f32
    %21 = arith.subf %19, %20 : f32
    %22 = vector.broadcast %18 : f32 to vector<4x128xf32>
    %23 = arith.mulf %0, %22 : vector<4x128xf32>
    %24 = vector.broadcast %21 : f32 to vector<4x128xf32>
    %25 = arith.addf %23, %24 : vector<4x128xf32>
    %c0_8 = arith.constant 0 : index
    %c0_9 = arith.constant 0 : index
    %26 = vector.load %arg3[%c0_8, %c0_9] : memref<4x128xf32, #tpu.memory_space<vmem>>, vector<4x128xf32>
    tpu.vector_store %arg3[%c0_8, %c0_9], %25 {strides = array<i32>} : memref<4x128xf32, #tpu.memory_space<vmem>>, vector<4x128xf32>,
    return
  }
}

</mosaic_0001>

<llo_original>
// kernel: tpu_custom_call.1
$region0: #{tpu_custom_call.1}
  #allocation0 [shape = 'u32[]', space=smem, size = 0x4, offset = 0x4, fixed_abs, tag = 'smem constant byte address 0x4 - core index']
  #allocation1 [shape = 'u32[144,128]{1,0:T(1,128)}', space=vmem, size = 0x12000, scoped, tag = 'internal scratch']
  #allocation2 [shape = 'f32[1]{0:T(128)S(6)}', space=smem, size = 0x200, scoped, tag = 'scoped memory for tpu_custom_call.1']
  #allocation3 [shape = 'f32[1]{0:T(128)S(6)}', space=smem, size = 0x200, scoped, tag = 'scoped memory for tpu_custom_call.1']
  %s0 = inlined_call_operand.vmem [shape: f32[4,128], index: 0, kind: input, shape index: {}]
  %s1 = inlined_call_operand.<no memory space> [shape: f32[1], index: 1, kind: input, shape index: {}]
  %s2 = inlined_call_operand.<no memory space> [shape: f32[1], index: 2, kind: input, shape index: {}]
  %s3 = inlined_call_operand.hbm [shape: f32[4,128], index: 3, kind: output, shape index: {}]
  %s4 = sld [smem:[#allocation0]]
  $region22: #{tpu_custom_call.1} parent=0
    _
  %s6 = ssub.s32 1, %s4
  %s7 = scalar_select 0, %s6, %s4
  %8 = sst [smem:[#allocation2]] %s1
  %9 = sst [smem:[#allocation3]] %s2
  $region1: #{tpu_custom_call.1} parent=0
    #allocation4 [shape = 'u8[2048]{0}', space=vmem, size = 0x800, scoped, tag = 'output window, operand 0, single buffered']
    #allocation5 [shape = 's32[1]{0}', space=sflag, size = 0x4, scoped, tag = 'scoped memory for tpu_custom_call.1']
    %10 = vsyncpa [#allocation5], 0
    // Predicated region
    $region2: #{tpu_custom_call.1} parent=1 // pred_check
      _
    $region3: #{tpu_custom_call.1} parent=1 // pred_check_branch
      %12 = sbr.rel (0) target = $region5
    $region4: #{tpu_custom_call.1} parent=1 // pred_region
      _
    $region5: #{tpu_custom_call.1} parent=1 // pred_fallthru
      _
    // Predicated region
    $region6: #{tpu_custom_call.1} parent=1 // pred_check
      _
    $region7: #{tpu_custom_call.1} parent=1 // pred_check_branch
      %14 = sbr.rel (0) target = $region9
    $region8: #{tpu_custom_call.1} parent=1 // pred_region
      _
    $region9: #{tpu_custom_call.1} parent=1 // pred_fallthru
      _
    // Predicated region
    $region10: #{tpu_custom_call.1} parent=1 // pred_check
      _
    $region11: #{tpu_custom_call.1} parent=1 // pred_check_branch
      %16 = sbr.rel (0) target = $region13
    $region12: #{tpu_custom_call.1} parent=1 // pred_region
      _
    $region13: #{tpu_custom_call.1} parent=1 // pred_fallthru
      _
    %v17 = vld [vmem:[%s0] sm:$0xf]
    %vm18 = vcmask 1043456
    %v19 = vsel %vm18, %v17, 0.0
    %20 = vadd.xlane.f32.xlu0 %v19
    %v21 = vpop.xlane.xlu0 %20
    %v22 = vrot.slane %v21, 4
    %v23 = vadd.f32 %v21, %v22
    %v24 = vrot.slane %v23, 2
    %v25 = vadd.f32 %v23, %v24
    %v26 = vrot.slane %v25, 1
    %v27 = vadd.f32 %v25, %v26
    %s28 = vtos %v27
    %v29 = vmul.f32 %v17, %v17
    %v30 = vsel %vm18, %v29, 0.0
    %31 = vadd.xlane.f32.xlu0 %v30
    %v32 = vpop.xlane.xlu0 %31
    %v33 = vrot.slane %v32, 4
    %v34 = vadd.f32 %v32, %v33
    %v35 = vrot.slane %v34, 2
    %v36 = vadd.f32 %v34, %v35
    %v37 = vrot.slane %v36, 1
    %v38 = vadd.f32 %v36, %v37
    %s39 = vtos %v38
    %s40 = smul.f32 %s28, 0.001953125
    %s41 = smul.f32 %s39, 0.001953125
    %s42 = smul.f32 %s40, %s40
    %s43 = ssub.f32 %s41, %s42
    %s44 = smax.f32 %s43, 0.0
    %s45 = sld [smem:[#allocation2]]
    %s46 = sadd.f32 %s44, 1e-05
    %v47 = vstv %s46
    %v48 = vrsqrt.pop %v47
    %s49 = vtos %v48
    %s50 = smul.f32 %s45, %s49
    %s51 = sld [smem:[#allocation3]]
    %s52 = smul.f32 %s40, %s50
    %s53 = ssub.f32 %s51, %s52
    %v54 = vstv %s50
    %v55 = vmul.f32 %v17, %v54
    %v56 = vstv %s53
    %v57 = vadd.f32 %v55, %v56
    %58 = vst [vmem:[#allocation4] sm:$0xf] %v57
    // Predicated region
    $region14: #{tpu_custom_call.1} parent=1 // pred_check
      _
    $region15: #{tpu_custom_call.1} parent=1 // pred_check_branch
      %60 = sbr.rel (0) target = $region17
    $region16: #{tpu_custom_call.1} parent=1 // pred_region
      %s62 = ssub.s32 64, 64
      %63 = vsyncadd [#allocation5], %s62
      %s65 = sshll.u32 [#allocation4], 4
      %s66 = int_to_ptr.vmem [resolvable:$true] %s65
      %68 = dma.vmem_to_hbm [thread:$0]  %s66, 64, %s3, [#allocation5]
    $region17: #{tpu_custom_call.1} parent=1 // pred_fallthru
      _
    // Predicated region
    $region18: #{tpu_custom_call.1} parent=1 // pred_check
      _
    $region19: #{tpu_custom_call.1} parent=1 // pred_check_branch
      %70 = sbr.rel (0) target = $region21
    $region20: #{tpu_custom_call.1} parent=1 // pred_region
      %71 = dma.done [#allocation5], 64
    $region21: #{tpu_custom_call.1} parent=1 // pred_fallthru
      _
    %72 = vsyncpa [#allocation5], 1

</llo_original>
